<compile_context>
chip_gen: v6e
topology: v6e:2x2x1
jax: 0.10.0
libtpu: 0.0.40
codegen_flags: <defaults>
</compile_context>

<pallas_src>
import functools

import jax
import jax.numpy as jnp
from jax import lax
from jax.experimental import pallas as pl
from jax.experimental.pallas import tpu as pltpu


# ----------------------------------------------------------------------------------
# Window helpers (batch dim kept: mask=True behaviour of the reference helpers)
# ----------------------------------------------------------------------------------
def window_partition(x, ws):
    # x: (B, C, H, W) -> (B, (H//ws)*(W//ws), C, ws, ws)
    B, C, H, W = x.shape
    x = x.reshape(B, C, H // ws, ws, W // ws, ws)
    x = jnp.transpose(x, (0, 2, 4, 1, 3, 5))  # (B, Hn, Wn, C, ws, ws)
    return x.reshape(B, (H // ws) * (W // ws), C, ws, ws)


def maskwindow_partition(xw, ws):
    # xw: (B, N, C, S, S) -> (B, N*(S//ws)**2, C, ws, ws)
    B, N, C, S, _ = xw.shape
    x = xw.reshape(B, N, C, S // ws, ws, S // ws, ws)
    x = jnp.transpose(x, (0, 1, 3, 5, 2, 4, 6))
    return x.reshape(B, N * (S // ws) ** 2, C, ws, ws)


def maskwindow_reverse(xw, ws, H, W):
    # xw: (B, (H//ws)*(W//ws), C, ws, ws) -> (B, C, H, W)
    B, N, C, _, _ = xw.shape
    x = xw.reshape(B, H // ws, W // ws, C, ws, ws)
    x = jnp.transpose(x, (0, 3, 1, 4, 2, 5))
    return x.reshape(B, C, H, W)


# ----------------------------------------------------------------------------------
# One-time parameter preprocessing (off the forward critical path)
# ----------------------------------------------------------------------------------
def fold_maskembed_params(w, b, gamma, beta, run_mean, run_var, eps=1e-5):
    """Fold eval-mode BatchNorm scale into the conv weights.
    Returns:
      w2d:   (K, Cout) bf16 weight matrix, K ordered (kh, kw, C) -- C last so it
             matches the lane-dense im2col column ordering.
      shift: (1, Cout) f32 = (bias - running_mean) * scale + beta.
    TODO(synk): train-mode BN (batch statistics) would need a cross-window reduction.
    """
    Cout, C, kh, kw = w.shape
    scale = gamma / jnp.sqrt(run_var + eps)                               # (Cout,)
    w2d = jnp.transpose(w, (2, 3, 1, 0)).reshape(kh * kw * C, Cout)       # (K, Cout)
    w2d = (w2d * scale[None, :]).astype(jnp.bfloat16)
    shift = ((b - run_mean) * scale + beta).reshape(1, Cout).astype(jnp.float32)
    return w2d, shift


# ----------------------------------------------------------------------------------
# Pallas kernel: fused im2col matmul conv (BN folded) + shift + ReLU
# ----------------------------------------------------------------------------------
def _conv_bn_relu_kernel(p_ref, w_ref, shift_ref, o_ref):
    # p_ref: (TM, K) bf16 patches; w_ref: (K, Cout) bf16; shift_ref: (1, Cout) f32.
    acc = jnp.dot(p_ref[...], w_ref[...], preferred_element_type=jnp.float32)
    acc = acc + shift_ref[...]
    o_ref[...] = jnp.maximum(acc, 0.0).astype(o_ref.dtype)


def conv2x2_s2_bn_relu_full(x, w2d, shift):
    """Conv2d(k=2, s=2) + BatchNorm2d(eval) + ReLU over the full NCHW tensor as an
    M-tiled Pallas im2col matmul.  x: (B, C, H, W) -> NHWC (B, H//2, W//2, Cout) bf16
    (no NCHW round trip; callers window the NHWC slab directly)."""
    B, C, H, W = x.shape
    K, Cout = w2d.shape
    OH, OW = H // 2, W // 2

    # Lane-dense im2col: x[n, c, 2*oh+i, 2*ow+j] == patches[n, oh, ow, i, j, c],
    # so the fastest axis of the (M, K) matrix is C (a full 128-lane run).
    patches = x.reshape(B, C, OH, 2, OW, 2)
    patches = jnp.transpose(patches, (0, 2, 4, 3, 5, 1))                  # (B, OH, OW, kh, kw, C)
    patches = patches.reshape(B * OH * OW, K).astype(jnp.bfloat16)
    M = patches.shape[0]

    # Row tile: 128 keeps the demo / v5e case a single full MXU tile; 256 fills the
    # v6e/v7x 256-wide MXU for production batches. Pad to whole tiles so every pass
    # is full and output stores stay unmasked full-lane vst.
    TM = 128 if M <= 128 else 256
    Mp = pl.cdiv(M, TM) * TM
    if Mp != M:
        patches = jnp.pad(patches, ((0, Mp - M), (0, 0)))

    cost = pl.CostEstimate(
        flops=2 * Mp * K * Cout,
        transcendentals=0,
        bytes_accessed=2 * Mp * K + 2 * K * Cout + 4 * Cout + 2 * Mp * Cout,
    )

    out = pl.pallas_call(
        _conv_bn_relu_kernel,
        out_shape=jax.ShapeDtypeStruct((Mp, Cout), jnp.bfloat16),
        grid=(Mp // TM,),
        in_specs=[
            pl.BlockSpec((TM, K), lambda i: (i, 0)),
            pl.BlockSpec((K, Cout), lambda i: (0, 0)),
            pl.BlockSpec((1, Cout), lambda i: (0, 0)),
        ],
        out_specs=pl.BlockSpec((TM, Cout), lambda i: (i, 0)),
        compiler_params=pltpu.CompilerParams(dimension_semantics=("parallel",)),
        cost_estimate=cost,
    )(patches, w2d, shift)

    return out[:M].reshape(B, OH, OW, Cout)


# ----------------------------------------------------------------------------------
# MaskEmbed forward
# ----------------------------------------------------------------------------------
def mask_embed_forward(folded_params, x, mask, key, size=4, keep_node=11):
    """x: (B, C, 16, 16), mask: (B, 1, 16, 16)  ->  (B, C, 14, 14)
    folded_params = fold_maskembed_params(...) output."""
    B, C, H, W = x.shape
    w2d, shift = folded_params
    Cout = w2d.shape[1]
    ws2 = size // 2

    # F.gumbel_softmax(mask, hard=True): forward value = one-hot argmax over last dim.
    # TODO(synk): straight-through gradient not implemented (inference-only forward).
    g = jax.random.gumbel(key, mask.shape, dtype=mask.dtype)
    hard = jax.nn.one_hot(jnp.argmax(mask + g, axis=-1), mask.shape[-1], dtype=mask.dtype)

    x_windows = window_partition(x, size)          # (B, nW, C, size, size)
    mask_windows = window_partition(hard, size)    # (B, nW, 1, size, size)

    # flatten(3) + L1 norm over dim=3 -> per-window score, then ascending sort.
    # NOTE: jnp.argsort is stable; torch.sort is not, so tied scores may pick a
    # different (but equally valid) window split than the PyTorch reference.
    nW, Cm = mask_windows.shape[1], mask_windows.shape[2]
    scores = jnp.sum(jnp.abs(mask_windows.reshape(B, nW, Cm, -1)), axis=3)  # (B, nW, 1)
    order = jnp.argsort(scores[..., 0], axis=1)                             # (B, nW) ascending
    idx_s = order[:, :keep_node]                                            # kept (raw) windows
    idx_b = order[:, keep_node:]                                            # downsampled windows

    # Conv+BN+ReLU over the whole image in one fused Pallas matmul (k=2/s=2 never
    # crosses a size-4 window boundary), then window the NHWC result directly into
    # (B, nW, Cout, 2, 2) -- one 6-D transpose, no NCHW round trip.
    conv_nhwc = conv2x2_s2_bn_relu_full(x, w2d, shift)                      # (B, OH, OW, Cout) bf16
    OH, OW = H // 2, W // 2
    conv_windows = conv_nhwc.reshape(B, OH // ws2, ws2, OW // ws2, ws2, Cout)
    conv_windows = jnp.transpose(conv_windows, (0, 1, 3, 5, 2, 4))          # (B, Hn, Wn, Cout, 2, 2)
    conv_windows = conv_windows.reshape(B, nW, Cout, ws2, ws2)

    xw_b = jnp.take_along_axis(conv_windows, idx_b[:, :, None, None, None], axis=1)
    xw_b = xw_b.astype(x.dtype)                                             # (B, 5, Cout, 2, 2)
    xw_s = jnp.take_along_axis(x_windows, idx_s[:, :, None, None, None], axis=1)
    xw_s = maskwindow_partition(xw_s, ws2)                                  # (B, 44, C, 2, 2)

    xcat = jnp.concatenate([xw_b, xw_s], axis=1)                            # (B, 49, C, 2, 2)
    return maskwindow_reverse(xcat, ws2, 14, 14)


# ----------------------------------------------------------------------------------
# Pure-JAX f32 reference (gather-then-conv, exactly mirroring the PyTorch module)
# ----------------------------------------------------------------------------------
def _reference_forward(raw_params, x, mask, key, size=4, keep_node=11, eps=1e-5):
    w, b, gamma, beta, run_mean, run_var = raw_params
    B, C, H, W = x.shape
    ws2 = size // 2

    g = jax.random.gumbel(key, mask.shape, dtype=mask.dtype)
    hard = jax.nn.one_hot(jnp.argmax(mask + g, axis=-1), mask.shape[-1], dtype=mask.dtype)

    x_windows = window_partition(x, size)
    mask_windows = window_partition(hard, size)
    nW, Cm = mask_windows.shape[1], mask_windows.shape[2]
    scores = jnp.sum(jnp.abs(mask_windows.reshape(B, nW, Cm, -1)), axis=3)
    order = jnp.argsort(scores[..., 0], axis=1)
    idx_s, idx_b = order[:, :keep_node], order[:, keep_node:]

    xw_s = jnp.take_along_axis(x_windows, idx_s[:, :, None, None, None], axis=1)
    xw_b = jnp.take_along_axis(x_windows, idx_b[:, :, None, None, None], axis=1)
    nb = xw_b.shape[1]

    yb = lax.conv_general_dilated(
        xw_b.reshape(B * nb, C, size, size), w, window_strides=(2, 2), padding="VALID",
        dimension_numbers=("NCHW", "OIHW", "NCHW"))
    yb = yb + b[None, :, None, None]
    scale = gamma / jnp.sqrt(run_var + eps)
    yb = (yb - run_mean[None, :, None, None]) * scale[None, :, None, None] + beta[None, :, None, None]
    yb = jnp.maximum(yb, 0.0)
    Cout = yb.shape[1]
    yb = yb.reshape(B, nb, Cout, ws2, ws2)

    xw_s = maskwindow_partition(xw_s, ws2)
    xcat = jnp.concatenate([yb, xw_s], axis=1)
    return maskwindow_reverse(xcat, ws2, 14, 14)


# ----------------------------------------------------------------------------------
if __name__ == "__main__":
    key = jax.random.PRNGKey(0)
    k_x, k_mask, k_w, k_b, k_g1, k_g2, k_g3, k_gum = jax.random.split(key, 8)

    # Small shapes consistent with the module (original: C=256, H=W=16, size=4, keep_node=11).
    B, C, H, W = 2, 128, 16, 16
    size, keep_node = 4, 11
    Cout = C  # embed_dim == dim (required so conv'd and raw windows concatenate)

    x = jax.random.normal(k_x, (B, C, H, W), jnp.float32)
    mask = jax.random.normal(k_mask, (B, 1, H, W), jnp.float32)

    # Deterministic synthetic parameters: Conv2d(C, Cout, k=2, s=2) + BatchNorm2d(Cout, eval).
    w = jax.random.normal(k_w, (Cout, C, 2, 2), jnp.float32) * 0.05
    b = jax.random.normal(k_b, (Cout,), jnp.float32) * 0.05
    gamma = 1.0 + 0.1 * jax.random.normal(k_g1, (Cout,), jnp.float32)
    beta = 0.1 * jax.random.normal(k_g2, (Cout,), jnp.float32)
    run_mean = 0.1 * jax.random.normal(k_g3, (Cout,), jnp.float32)
    run_var = jnp.ones((Cout,), jnp.float32)
    raw_params = (w, b, gamma, beta, run_mean, run_var)

    # One-time parameter folding (off the per-call critical path).
    folded_params = fold_maskembed_params(*raw_params)

    fwd = jax.jit(functools.partial(mask_embed_forward, size=size, keep_node=keep_node))
    out = jax.block_until_ready(fwd(folded_params, x, mask, k_gum))
    assert out.shape == (B, C, 14, 14), out.shape
    assert bool(jnp.all(jnp.isfinite(out)))

    # Parity vs. the f32 gather-then-conv reference (loose tolerance: bf16 operands).
    ref = jax.block_until_ready(
        _reference_forward(raw_params, x, mask, k_gum, size=size, keep_node=keep_node))
    max_err = float(jnp.max(jnp.abs(out.astype(jnp.float32) - ref)))
    assert max_err < 1.5e-1, f"max abs error vs reference: {max_err}"

    print("KERNEL_OK")
</pallas_src>

<mosaic_0001>
module attributes {stable_mosaic.version = 11 : i64} {
  func.func @_conv_bn_relu_kernel(%arg0: i32, %arg1: memref<128x512xbf16, #tpu.memory_space<vmem>>, %arg2: memref<512x128xbf16, #tpu.memory_space<vmem>>, %arg3: memref<1x128xf32, #tpu.memory_space<vmem>>, %arg4: memref<128x128xbf16, #tpu.memory_space<vmem>>) attributes {dimension_semantics = [#tpu.dimension_semantics<parallel>], iteration_bounds = array<i64: 1>, scalar_prefetch = 0 : i64, scratch_operands = 0 : i64, tpu.core_type = #tpu.core_type<tc>, window_params = [{transform_indices = @transform_0, window_bounds = array<i64: 128, 512>}, {pipeline_mode = #tpu.pipeline_mode<synchronous>, transform_indices = @transform_1, window_bounds = array<i64: 512, 128>}, {pipeline_mode = #tpu.pipeline_mode<synchronous>, transform_indices = @transform_2, window_bounds = array<i64: 1, 128>}, {transform_indices = @transform_3, window_bounds = array<i64: 128, 128>}]} {
    %c0 = arith.constant 0 : index
    %c0_0 = arith.constant 0 : index
    %0 = vector.load %arg1[%c0, %c0_0] : memref<128x512xbf16, #tpu.memory_space<vmem>>, vector<128x512xbf16>
    %c0_1 = arith.constant 0 : index
    %c0_2 = arith.constant 0 : index
    %1 = vector.load %arg2[%c0_1, %c0_2] : memref<512x128xbf16, #tpu.memory_space<vmem>>, vector<512x128xbf16>
    %cst = arith.constant dense<0.000000e+00> : vector<128x128xf32>
    %2 = tpu.matmul %0, %1, %cst {dimension_numbers = #tpu.dot_dimension_numbers<[1], [0], [0], [1], [0, 0, 1, 1], [], []>} : vector<128x512xbf16>, vector<512x128xbf16>, vector<128x128xf32> -> vector<128x128xf32>
    %c0_3 = arith.constant 0 : index
    %c0_4 = arith.constant 0 : index
    %3 = vector.load %arg3[%c0_3, %c0_4] : memref<1x128xf32, #tpu.memory_space<vmem>>, vector<1x128xf32>
    %4 = vector.broadcast %3 : vector<1x128xf32> to vector<128x128xf32>
    %5 = arith.addf %2, %4 : vector<128x128xf32>
    %cst_5 = arith.constant 0.000000e+00 : f32
    %6 = vector.broadcast %cst_5 : f32 to vector<128x128xf32>
    %7 = arith.maximumf %5, %6 : vector<128x128xf32>
    %8 = arith.truncf %7 : vector<128x128xf32> to vector<128x128xbf16>
    %c0_6 = arith.constant 0 : index
    %c0_7 = arith.constant 0 : index
    %9 = vector.load %arg4[%c0_6, %c0_7] : memref<128x128xbf16, #tpu.memory_space<vmem>>, vector<128x128xbf16>
    tpu.vector_store %arg4[%c0_6, %c0_7], %8 {strides = array<i32>} : memref<128x128xbf16, #tpu.memory_space<vmem>>, vector<128x128xbf16>,
    return
  }
  func.func @transform_0(%arg0: i32) -> (i32, i32) {
    %c0_i32 = arith.constant 0 : i32
    %c0_i32_0 = arith.constant 0 : i32
    return %arg0, %c0_i32 : i32, i32
  }
  func.func @transform_1(%arg0: i32) -> (i32, i32) {
    %c0_i32 = arith.constant 0 : i32
    %c0_i32_0 = arith.constant 0 : i32
    %c0_i32_1 = arith.constant 0 : i32
    return %c0_i32, %c0_i32_0 : i32, i32
  }
  func.func @transform_2(%arg0: i32) -> (i32, i32) {
    %c0_i32 = arith.constant 0 : i32
    %c0_i32_0 = arith.constant 0 : i32
    %c0_i32_1 = arith.constant 0 : i32
    return %c0_i32, %c0_i32_0 : i32, i32
  }
  func.func @transform_3(%arg0: i32) -> (i32, i32) {
    %c0_i32 = arith.constant 0 : i32
    %c0_i32_0 = arith.constant 0 : i32
    return %arg0, %c0_i32 : i32, i32
  }
}

</mosaic_0001>

<llo_original>
// kernel: mask_embed_forward.1
$region0: #{mask_embed_forward.1}
  #allocation0 [shape = 'u32[]', space=smem, size = 0x4, offset = 0x4, fixed_abs, tag = 'smem constant byte address 0x4 - core index']
  #allocation1 [shape = 'u32[144,128]{1,0:T(1,128)}', space=vmem, size = 0x12000, scoped, tag = 'internal scratch']
  %s0 = inlined_call_operand.vmem [shape: bf16[128,512], index: 0, kind: input, shape index: {}]
  %s1 = inlined_call_operand.vmem [shape: bf16[512,128], index: 1, kind: input, shape index: {}]
  %s2 = inlined_call_operand.vmem [shape: f32[1,128], index: 2, kind: input, shape index: {}]
  %s3 = inlined_call_operand.vmem [shape: bf16[128,128], index: 3, kind: output, shape index: {}]
  %s4 = sld [smem:[#allocation0]]
  $region22: #{mask_embed_forward.1} parent=0
    _
  %s6 = ssub.s32 1, %s4
  %s7 = scalar_select 0, %s6, %s4
  // Predicated region
  $region2: #{mask_embed_forward.1} parent=0 // pred_check
    _
  $region3: #{mask_embed_forward.1} parent=0 // pred_check_branch
    %9 = sbr.rel (0) target = $region5
  $region4: #{mask_embed_forward.1} parent=0 // pred_region
    _
  $region5: #{mask_embed_forward.1} parent=0 // pred_fallthru
    _
  // Predicated region
  $region6: #{mask_embed_forward.1} parent=0 // pred_check
    _
  $region7: #{mask_embed_forward.1} parent=0 // pred_check_branch
    %11 = sbr.rel (0) target = $region9
  $region8: #{mask_embed_forward.1} parent=0 // pred_region
    _
  $region9: #{mask_embed_forward.1} parent=0 // pred_fallthru
    _
  // Predicated region
  $region10: #{mask_embed_forward.1} parent=0 // pred_check
    _
  $region11: #{mask_embed_forward.1} parent=0 // pred_check_branch
    %13 = sbr.rel (0) target = $region13
  $region12: #{mask_embed_forward.1} parent=0 // pred_region
    _
  $region13: #{mask_embed_forward.1} parent=0 // pred_fallthru
    _
  %v15 = vld [vmem:[%s0] sm:$0xff]
  %v16 = vld [vmem:[%s0 + $0x8] sm:$0xff]
  %v17 = vld [vmem:[%s0 + $0x10] sm:$0xff]
  %v18 = vld [vmem:[%s0 + $0x18] sm:$0xff]
  %v19 = vld [vmem:[%s0 + $0x20] sm:$0xff]
  %v20 = vld [vmem:[%s0 + $0x28] sm:$0xff]
  %v21 = vld [vmem:[%s0 + $0x30] sm:$0xff]
  %v22 = vld [vmem:[%s0 + $0x38] sm:$0xff]
  %v23 = vld [vmem:[%s0 + $0x40] sm:$0xff]
  %v24 = vld [vmem:[%s0 + $0x48] sm:$0xff]
  %v25 = vld [vmem:[%s0 + $0x50] sm:$0xff]
  %v26 = vld [vmem:[%s0 + $0x58] sm:$0xff]
  %v27 = vld [vmem:[%s0 + $0x60] sm:$0xff]
  %v28 = vld [vmem:[%s0 + $0x68] sm:$0xff]
  %v29 = vld [vmem:[%s0 + $0x70] sm:$0xff]
  %v30 = vld [vmem:[%s0 + $0x78] sm:$0xff]
  %v31 = vld [vmem:[%s0 + $0x80] sm:$0xff]
  %v32 = vld [vmem:[%s0 + $0x88] sm:$0xff]
  %v33 = vld [vmem:[%s0 + $0x90] sm:$0xff]
  %v34 = vld [vmem:[%s0 + $0x98] sm:$0xff]
  %v35 = vld [vmem:[%s0 + $0xa0] sm:$0xff]
  %v36 = vld [vmem:[%s0 + $0xa8] sm:$0xff]
  %v37 = vld [vmem:[%s0 + $0xb0] sm:$0xff]
  %v38 = vld [vmem:[%s0 + $0xb8] sm:$0xff]
  %v39 = vld [vmem:[%s0 + $0xc0] sm:$0xff]
  %v40 = vld [vmem:[%s0 + $0xc8] sm:$0xff]
  %v41 = vld [vmem:[%s0 + $0xd0] sm:$0xff]
  %v42 = vld [vmem:[%s0 + $0xd8] sm:$0xff]
  %v43 = vld [vmem:[%s0 + $0xe0] sm:$0xff]
  %v44 = vld [vmem:[%s0 + $0xe8] sm:$0xff]
  %v45 = vld [vmem:[%s0 + $0xf0] sm:$0xff]
  %v46 = vld [vmem:[%s0 + $0xf8] sm:$0xff]
  %v47 = vld [vmem:[%s1] sm:$0xf]
  %v48 = vld [vmem:[%s1 + $0x4] sm:$0xf]
  %v49 = vld [vmem:[%s1 + $0x8] sm:$0xf]
  %v50 = vld [vmem:[%s1 + $0xc] sm:$0xf]
  %v51 = vld [vmem:[%s1 + $0x10] sm:$0xf]
  %v52 = vld [vmem:[%s1 + $0x14] sm:$0xf]
  %v53 = vld [vmem:[%s1 + $0x18] sm:$0xf]
  %v54 = vld [vmem:[%s1 + $0x1c] sm:$0xf]
  %v55 = vld [vmem:[%s1 + $0x20] sm:$0xf]
  %v56 = vld [vmem:[%s1 + $0x24] sm:$0xf]
  %v57 = vld [vmem:[%s1 + $0x28] sm:$0xf]
  %v58 = vld [vmem:[%s1 + $0x2c] sm:$0xf]
  %v59 = vld [vmem:[%s1 + $0x30] sm:$0xf]
  %v60 = vld [vmem:[%s1 + $0x34] sm:$0xf]
  %v61 = vld [vmem:[%s1 + $0x38] sm:$0xf]
  %v62 = vld [vmem:[%s1 + $0x3c] sm:$0xf]
  %v63 = vld [vmem:[%s1 + $0x40] sm:$0xf]
  %v64 = vld [vmem:[%s1 + $0x44] sm:$0xf]
  %v65 = vld [vmem:[%s1 + $0x48] sm:$0xf]
  %v66 = vld [vmem:[%s1 + $0x4c] sm:$0xf]
  %v67 = vld [vmem:[%s1 + $0x50] sm:$0xf]
  %v68 = vld [vmem:[%s1 + $0x54] sm:$0xf]
  %v69 = vld [vmem:[%s1 + $0x58] sm:$0xf]
  %v70 = vld [vmem:[%s1 + $0x5c] sm:$0xf]
  %v71 = vld [vmem:[%s1 + $0x60] sm:$0xf]
  %v72 = vld [vmem:[%s1 + $0x64] sm:$0xf]
  %v73 = vld [vmem:[%s1 + $0x68] sm:$0xf]
  %v74 = vld [vmem:[%s1 + $0x6c] sm:$0xf]
  %v75 = vld [vmem:[%s1 + $0x70] sm:$0xf]
  %v76 = vld [vmem:[%s1 + $0x74] sm:$0xf]
  %v77 = vld [vmem:[%s1 + $0x78] sm:$0xf]
  %v78 = vld [vmem:[%s1 + $0x7c] sm:$0xf]
  %v79 = vld [vmem:[%s1 + $0x80] sm:$0xf]
  %v80 = vld [vmem:[%s1 + $0x84] sm:$0xf]
  %v81 = vld [vmem:[%s1 + $0x88] sm:$0xf]
  %v82 = vld [vmem:[%s1 + $0x8c] sm:$0xf]
  %v83 = vld [vmem:[%s1 + $0x90] sm:$0xf]
  %v84 = vld [vmem:[%s1 + $0x94] sm:$0xf]
  %v85 = vld [vmem:[%s1 + $0x98] sm:$0xf]
  %v86 = vld [vmem:[%s1 + $0x9c] sm:$0xf]
  %v87 = vld [vmem:[%s1 + $0xa0] sm:$0xf]
  %v88 = vld [vmem:[%s1 + $0xa4] sm:$0xf]
  %v89 = vld [vmem:[%s1 + $0xa8] sm:$0xf]
  %v90 = vld [vmem:[%s1 + $0xac] sm:$0xf]
  %v91 = vld [vmem:[%s1 + $0xb0] sm:$0xf]
  %v92 = vld [vmem:[%s1 + $0xb4] sm:$0xf]
  %v93 = vld [vmem:[%s1 + $0xb8] sm:$0xf]
  %v94 = vld [vmem:[%s1 + $0xbc] sm:$0xf]
  %v95 = vld [vmem:[%s1 + $0xc0] sm:$0xf]
  %v96 = vld [vmem:[%s1 + $0xc4] sm:$0xf]
  %v97 = vld [vmem:[%s1 + $0xc8] sm:$0xf]
  %v98 = vld [vmem:[%s1 + $0xcc] sm:$0xf]
  %v99 = vld [vmem:[%s1 + $0xd0] sm:$0xf]
  %v100 = vld [vmem:[%s1 + $0xd4] sm:$0xf]
  %v101 = vld [vmem:[%s1 + $0xd8] sm:$0xf]
  %v102 = vld [vmem:[%s1 + $0xdc] sm:$0xf]
  %v103 = vld [vmem:[%s1 + $0xe0] sm:$0xf]
  %v104 = vld [vmem:[%s1 + $0xe4] sm:$0xf]
  %v105 = vld [vmem:[%s1 + $0xe8] sm:$0xf]
  %v106 = vld [vmem:[%s1 + $0xec] sm:$0xf]
  %v107 = vld [vmem:[%s1 + $0xf0] sm:$0xf]
  %v108 = vld [vmem:[%s1 + $0xf4] sm:$0xf]
  %v109 = vld [vmem:[%s1 + $0xf8] sm:$0xf]
  %v110 = vld [vmem:[%s1 + $0xfc] sm:$0xf]
  %v111 = vld [vmem:[%s2] sm:$0x1]
  %v113 = vlaneseq
  %v114 = vshrl.u32 %v113, 7
  %v115 = vsub.s32 0, %v114
  %v116 = vrot.slane %v111, %v115
  %v150 = vunpack.c.l.b16 %v15
  %v151 = vunpack.c.h.b16 %v15
  %v152 = vunpack.c.l.b16 %v16
  %v153 = vunpack.c.h.b16 %v16
  %v154 = vunpack.c.l.b16 %v17
  %v155 = vunpack.c.h.b16 %v17
  %v156 = vunpack.c.l.b16 %v18
  %v157 = vunpack.c.h.b16 %v18
  %v158 = vunpack.c.l.b16 %v19
  %v159 = vunpack.c.h.b16 %v19
  %v160 = vunpack.c.l.b16 %v20
  %v161 = vunpack.c.h.b16 %v20
  %v162 = vunpack.c.l.b16 %v21
  %v163 = vunpack.c.h.b16 %v21
  %v164 = vunpack.c.l.b16 %v22
  %v165 = vunpack.c.h.b16 %v22
  %v166 = vunpack.c.l.b16 %v23
  %v167 = vunpack.c.h.b16 %v23
  %v168 = vunpack.c.l.b16 %v24
  %v169 = vunpack.c.h.b16 %v24
  %v170 = vunpack.c.l.b16 %v25
  %v171 = vunpack.c.h.b16 %v25
  %v172 = vunpack.c.l.b16 %v26
  %v173 = vunpack.c.h.b16 %v26
  %v174 = vunpack.c.l.b16 %v27
  %v175 = vunpack.c.h.b16 %v27
  %v176 = vunpack.c.l.b16 %v28
  %v177 = vunpack.c.h.b16 %v28
  %v178 = vunpack.c.l.b16 %v29
  %v179 = vunpack.c.h.b16 %v29
  %v180 = vunpack.c.l.b16 %v30
  %v181 = vunpack.c.h.b16 %v30
  %v182 = vunpack.c.l.b16 %v31
  %v183 = vunpack.c.h.b16 %v31
  %v184 = vunpack.c.l.b16 %v32
  %v185 = vunpack.c.h.b16 %v32
  %v186 = vunpack.c.l.b16 %v33
  %v187 = vunpack.c.h.b16 %v33
  %v188 = vunpack.c.l.b16 %v34
  %v189 = vunpack.c.h.b16 %v34
  %v190 = vunpack.c.l.b16 %v35
  %v191 = vunpack.c.h.b16 %v35
  %v192 = vunpack.c.l.b16 %v36
  %v193 = vunpack.c.h.b16 %v36
  %v194 = vunpack.c.l.b16 %v37
  %v195 = vunpack.c.h.b16 %v37
  %v196 = vunpack.c.l.b16 %v38
  %v197 = vunpack.c.h.b16 %v38
  %v198 = vunpack.c.l.b16 %v39
  %v199 = vunpack.c.h.b16 %v39
  %v200 = vunpack.c.l.b16 %v40
  %v201 = vunpack.c.h.b16 %v40
  %v202 = vunpack.c.l.b16 %v41
  %v203 = vunpack.c.h.b16 %v41
  %v204 = vunpack.c.l.b16 %v42
  %v205 = vunpack.c.h.b16 %v42
  %v206 = vunpack.c.l.b16 %v43
  %v207 = vunpack.c.h.b16 %v43
  %v208 = vunpack.c.l.b16 %v44
  %v209 = vunpack.c.h.b16 %v44
  %v210 = vunpack.c.l.b16 %v45
  %v211 = vunpack.c.h.b16 %v45
  %v212 = vunpack.c.l.b16 %v46
  %v213 = vunpack.c.h.b16 %v46
  %v214 = vpack.c.b16 %v154, %v150
  %v215 = vpack.c.b16 %v155, %v151
  %v216 = vpack.c.b16 %v156, %v152
  %v217 = vpack.c.b16 %v157, %v153
  %v218 = vpack.c.b16 %v162, %v158
  %v219 = vpack.c.b16 %v163, %v159
  %v220 = vpack.c.b16 %v164, %v160
  %v221 = vpack.c.b16 %v165, %v161
  %v222 = vpack.c.b16 %v170, %v166
  %v223 = vpack.c.b16 %v171, %v167
  %v224 = vpack.c.b16 %v172, %v168
  %v225 = vpack.c.b16 %v173, %v169
  %v226 = vpack.c.b16 %v178, %v174
  %v227 = vpack.c.b16 %v179, %v175
  %v228 = vpack.c.b16 %v180, %v176
  %v229 = vpack.c.b16 %v181, %v177
  %v230 = vpack.c.b16 %v186, %v182
  %v231 = vpack.c.b16 %v187, %v183
  %v232 = vpack.c.b16 %v188, %v184
  %v233 = vpack.c.b16 %v189, %v185
  %v234 = vpack.c.b16 %v194, %v190
  %v235 = vpack.c.b16 %v195, %v191
  %v236 = vpack.c.b16 %v196, %v192
  %v237 = vpack.c.b16 %v197, %v193
  %v238 = vpack.c.b16 %v202, %v198
  %v239 = vpack.c.b16 %v203, %v199
  %v240 = vpack.c.b16 %v204, %v200
  %v241 = vpack.c.b16 %v205, %v201
  %v242 = vpack.c.b16 %v210, %v206
  %v243 = vpack.c.b16 %v211, %v207
  %v244 = vpack.c.b16 %v212, %v208
  %v245 = vpack.c.b16 %v213, %v209
  %v342 = vunpack.c.l.b16 %v47
  %v343 = vunpack.c.l.b16 %v48
  %v344 = vunpack.c.l.b16 %v49
  %v345 = vunpack.c.l.b16 %v50
  %v346 = vunpack.c.l.b16 %v51
  %v347 = vunpack.c.l.b16 %v52
  %v348 = vunpack.c.l.b16 %v53
  %v349 = vunpack.c.l.b16 %v54
  %v350 = vunpack.c.l.b16 %v55
  %v351 = vunpack.c.l.b16 %v56
  %v352 = vunpack.c.l.b16 %v57
  %v353 = vunpack.c.l.b16 %v58
  %v354 = vunpack.c.l.b16 %v59
  %v355 = vunpack.c.l.b16 %v60
  %v356 = vunpack.c.l.b16 %v61
  %v357 = vunpack.c.l.b16 %v62
  %v358 = vunpack.c.l.b16 %v63
  %v359 = vunpack.c.l.b16 %v64
  %v360 = vunpack.c.l.b16 %v65
  %v361 = vunpack.c.l.b16 %v66
  %v362 = vunpack.c.l.b16 %v67
  %v363 = vunpack.c.l.b16 %v68
  %v364 = vunpack.c.l.b16 %v69
  %v365 = vunpack.c.l.b16 %v70
  %v366 = vunpack.c.l.b16 %v71
  %v367 = vunpack.c.l.b16 %v72
  %v368 = vunpack.c.l.b16 %v73
  %v369 = vunpack.c.l.b16 %v74
  %v370 = vunpack.c.l.b16 %v75
  %v371 = vunpack.c.l.b16 %v76
  %v372 = vunpack.c.l.b16 %v77
  %v373 = vunpack.c.l.b16 %v78
  %v374 = vunpack.c.l.b16 %v79
  %v375 = vunpack.c.l.b16 %v80
  %v376 = vunpack.c.l.b16 %v81
  %v377 = vunpack.c.l.b16 %v82
  %v378 = vunpack.c.l.b16 %v83
  %v379 = vunpack.c.l.b16 %v84
  %v380 = vunpack.c.l.b16 %v85
  %v381 = vunpack.c.l.b16 %v86
  %v382 = vunpack.c.l.b16 %v87
  %v383 = vunpack.c.l.b16 %v88
  %v384 = vunpack.c.l.b16 %v89
  %v385 = vunpack.c.l.b16 %v90
  %v386 = vunpack.c.l.b16 %v91
  %v387 = vunpack.c.l.b16 %v92
  %v388 = vunpack.c.l.b16 %v93
  %v389 = vunpack.c.l.b16 %v94
  %v390 = vunpack.c.l.b16 %v95
  %v391 = vunpack.c.l.b16 %v96
  %v392 = vunpack.c.l.b16 %v97
  %v393 = vunpack.c.l.b16 %v98
  %v394 = vunpack.c.l.b16 %v99
  %v395 = vunpack.c.l.b16 %v100
  %v396 = vunpack.c.l.b16 %v101
  %v397 = vunpack.c.l.b16 %v102
  %v398 = vunpack.c.l.b16 %v103
  %v399 = vunpack.c.l.b16 %v104
  %v400 = vunpack.c.l.b16 %v105
  %v401 = vunpack.c.l.b16 %v106
  %v402 = vunpack.c.l.b16 %v107
  %v403 = vunpack.c.l.b16 %v108
  %v404 = vunpack.c.l.b16 %v109
  %v405 = vunpack.c.l.b16 %v110
  %v406 = vpack.c.b16 %v343, %v342
  %v407 = vpack.c.b16 %v345, %v344
  %v408 = vpack.c.b16 %v347, %v346
  %v409 = vpack.c.b16 %v349, %v348
  %v410 = vpack.c.b16 %v351, %v350
  %v411 = vpack.c.b16 %v353, %v352
  %v412 = vpack.c.b16 %v355, %v354
  %v413 = vpack.c.b16 %v357, %v356
  %v414 = vpack.c.b16 %v359, %v358
  %v415 = vpack.c.b16 %v361, %v360
  %v416 = vpack.c.b16 %v363, %v362
  %v417 = vpack.c.b16 %v365, %v364
  %v418 = vpack.c.b16 %v367, %v366
  %v419 = vpack.c.b16 %v369, %v368
  %v420 = vpack.c.b16 %v371, %v370
  %v421 = vpack.c.b16 %v373, %v372
  %v422 = vpack.c.b16 %v375, %v374
  %v423 = vpack.c.b16 %v377, %v376
  %v424 = vpack.c.b16 %v379, %v378
  %v425 = vpack.c.b16 %v381, %v380
  %v426 = vpack.c.b16 %v383, %v382
  %v427 = vpack.c.b16 %v385, %v384
  %v428 = vpack.c.b16 %v387, %v386
  %v429 = vpack.c.b16 %v389, %v388
  %v430 = vpack.c.b16 %v391, %v390
  %v431 = vpack.c.b16 %v393, %v392
  %v432 = vpack.c.b16 %v395, %v394
  %v433 = vpack.c.b16 %v397, %v396
  %v434 = vpack.c.b16 %v399, %v398
  %v435 = vpack.c.b16 %v401, %v400
  %v436 = vpack.c.b16 %v403, %v402
  %v437 = vpack.c.b16 %v405, %v404
  %470 = vmatprep.subr.bf16.mxu0 0
  %471 = vmatpush1.bf16.msra.mxu0 %v413
  %472 = vmatprep.subr.bf16.mxu0 0
  %473 = vmatpush1.bf16.msra.mxu0 %v412
  %474 = vmatprep.subr.bf16.mxu0 0
  %475 = vmatpush1.bf16.msra.mxu0 %v411
  %476 = vmatprep.subr.bf16.mxu0 0
  %477 = vmatpush1.bf16.msra.mxu0 %v410
  %478 = vmatprep.subr.bf16.mxu0 0
  %479 = vmatpush1.bf16.msra.mxu0 %v409
  %480 = vmatprep.subr.bf16.mxu0 0
  %481 = vmatpush1.bf16.msra.mxu0 %v408
  %482 = vmatprep.subr.bf16.mxu0 0
  %483 = vmatpush1.bf16.msra.mxu0 %v407
  %484 = vmatprep.subr.bf16.mxu0 0
  %485 = vmatpush1.bf16.msra.mxu0 %v406
  %486 = vmatprep.subr.bf16.mxu0 0
  %487 = vmatpush2.bf16.msra.mxu0 %v421
  %488 = vmatprep.subr.bf16.mxu0 0
  %489 = vmatpush2.bf16.msra.mxu0 %v420
  %490 = vmatprep.subr.bf16.mxu0 0
  %491 = vmatpush2.bf16.msra.mxu0 %v419
  %492 = vmatprep.subr.bf16.mxu0 0
  %493 = vmatpush2.bf16.msra.mxu0 %v418
  %494 = vmatprep.subr.bf16.mxu0 0
  %495 = vmatpush2.bf16.msra.mxu0 %v417
  %496 = vmatprep.subr.bf16.mxu0 0
  %497 = vmatpush2.bf16.msra.mxu0 %v416
  %498 = vmatprep.subr.bf16.mxu0 0
  %499 = vmatpush2.bf16.msra.mxu0 %v415
  %500 = vmatprep.subr.bf16.mxu0 0
  %501 = vmatpush2.bf16.msra.mxu0 %v414
  %502 = vmatprep.mubr.bf16.mxu0 %v215
  %503 = vmatmul.mubr.bf16.gmra.mxu0 %v214
  %v504 = vpop.f32.mrf.mxu0
  %v505 = vadd.f32 %v116, %v504
  %v506 = vpop.f32.mrf.mxu0
  %v507 = vpop.f32.mrf.mxu0
  %v508 = vadd.f32 %v116, %v507
  %v509 = vpop.f32.mrf.mxu0
  %510 = vmatprep.mubr.bf16.mxu0 %v219
  %511 = vmatmul.mubr.bf16.gmra.mxu0 %v218
  %v512 = vpop.f32.mrf.mxu0
  %v513 = vadd.f32 %v116, %v512
  %v514 = vpop.f32.mrf.mxu0
  %v515 = vpop.f32.mrf.mxu0
  %v516 = vadd.f32 %v116, %v515
  %v517 = vpop.f32.mrf.mxu0
  %518 = vmatprep.mubr.bf16.mxu0 %v223
  %519 = vmatmul.mubr.bf16.gmra.mxu0 %v222
  %v520 = vpop.f32.mrf.mxu0
  %v521 = vadd.f32 %v116, %v520
  %v522 = vpop.f32.mrf.mxu0
  %v523 = vpop.f32.mrf.mxu0
  %v524 = vadd.f32 %v116, %v523
  %v525 = vpop.f32.mrf.mxu0
  %526 = vmatprep.mubr.bf16.mxu0 %v227
  %527 = vmatmul.mubr.bf16.gmra.mxu0 %v226
  %v528 = vpop.f32.mrf.mxu0
  %v529 = vadd.f32 %v116, %v528
  %v530 = vpop.f32.mrf.mxu0
  %v531 = vpop.f32.mrf.mxu0
  %v532 = vadd.f32 %v116, %v531
  %v533 = vpop.f32.mrf.mxu0
  %534 = vmatprep.mubr.bf16.mxu0 %v231
  %535 = vmatmul.mubr.bf16.gmra.mxu0 %v230
  %v536 = vpop.f32.mrf.mxu0
  %v537 = vadd.f32 %v116, %v536
  %v538 = vpop.f32.mrf.mxu0
  %v539 = vpop.f32.mrf.mxu0
  %v540 = vadd.f32 %v116, %v539
  %v541 = vpop.f32.mrf.mxu0
  %542 = vmatprep.mubr.bf16.mxu0 %v235
  %543 = vmatmul.mubr.bf16.gmra.mxu0 %v234
  %v544 = vpop.f32.mrf.mxu0
  %v545 = vadd.f32 %v116, %v544
  %v546 = vpop.f32.mrf.mxu0
  %v547 = vpop.f32.mrf.mxu0
  %v548 = vadd.f32 %v116, %v547
  %v549 = vpop.f32.mrf.mxu0
  %550 = vmatprep.mubr.bf16.mxu0 %v239
  %551 = vmatmul.mubr.bf16.gmra.mxu0 %v238
  %v552 = vpop.f32.mrf.mxu0
  %v553 = vadd.f32 %v116, %v552
  %v554 = vpop.f32.mrf.mxu0
  %v555 = vpop.f32.mrf.mxu0
  %v556 = vadd.f32 %v116, %v555
  %v557 = vpop.f32.mrf.mxu0
  %558 = vmatprep.mubr.bf16.mxu0 %v243
  %559 = vmatmul.mubr.bf16.gmra.mxu0 %v242
  %v560 = vpop.f32.mrf.mxu0
  %v561 = vadd.f32 %v116, %v560
  %v562 = vpop.f32.mrf.mxu0
  %v563 = vpop.f32.mrf.mxu0
  %v564 = vadd.f32 %v116, %v563
  %v565 = vpop.f32.mrf.mxu0
  %566 = vdwg.mxu0
  %567 = vmatprep.subr.bf16.mxu0 0
  %568 = vmatpush1.bf16.msra.mxu0 %v429
  %569 = vmatprep.subr.bf16.mxu0 0
  %570 = vmatpush1.bf16.msra.mxu0 %v428
  %571 = vmatprep.subr.bf16.mxu0 0
  %572 = vmatpush1.bf16.msra.mxu0 %v427
  %573 = vmatprep.subr.bf16.mxu0 0
  %574 = vmatpush1.bf16.msra.mxu0 %v426
  %575 = vmatprep.subr.bf16.mxu0 0
  %576 = vmatpush1.bf16.msra.mxu0 %v425
  %577 = vmatprep.subr.bf16.mxu0 0
  %578 = vmatpush1.bf16.msra.mxu0 %v424
  %579 = vmatprep.subr.bf16.mxu0 0
  %580 = vmatpush1.bf16.msra.mxu0 %v423
  %581 = vmatprep.subr.bf16.mxu0 0
  %582 = vmatpush1.bf16.msra.mxu0 %v422
  %583 = vmatprep.subr.bf16.mxu0 0
  %584 = vmatpush2.bf16.msra.mxu0 %v437
  %585 = vmatprep.subr.bf16.mxu0 0
  %586 = vmatpush2.bf16.msra.mxu0 %v436
  %587 = vmatprep.subr.bf16.mxu0 0
  %588 = vmatpush2.bf16.msra.mxu0 %v435
  %589 = vmatprep.subr.bf16.mxu0 0
  %590 = vmatpush2.bf16.msra.mxu0 %v434
  %591 = vmatprep.subr.bf16.mxu0 0
  %592 = vmatpush2.bf16.msra.mxu0 %v433
  %593 = vmatprep.subr.bf16.mxu0 0
  %594 = vmatpush2.bf16.msra.mxu0 %v432
  %595 = vmatprep.subr.bf16.mxu0 0
  %596 = vmatpush2.bf16.msra.mxu0 %v431
  %597 = vmatprep.subr.bf16.mxu0 0
  %598 = vmatpush2.bf16.msra.mxu0 %v430
  %599 = vmatprep.mubr.bf16.mxu0 %v217
  %600 = vmatmul.mubr.bf16.gmra.mxu0 %v216
  %v601 = vpop.f32.mrf.mxu0
  %v602 = vadd.f32 %v505, %v601
  %v603 = vpop.f32.mrf.mxu0
  %v604 = vpop.f32.mrf.mxu0
  %v605 = vadd.f32 %v508, %v604
  %v606 = vpop.f32.mrf.mxu0
  %607 = vmatprep.mubr.bf16.mxu0 %v221
  %608 = vmatmul.mubr.bf16.gmra.mxu0 %v220
  %v609 = vpop.f32.mrf.mxu0
  %v610 = vadd.f32 %v513, %v609
  %v611 = vpop.f32.mrf.mxu0
  %v612 = vpop.f32.mrf.mxu0
  %v613 = vadd.f32 %v516, %v612
  %v614 = vpop.f32.mrf.mxu0
  %615 = vmatprep.mubr.bf16.mxu0 %v225
  %616 = vmatmul.mubr.bf16.gmra.mxu0 %v224
  %v617 = vpop.f32.mrf.mxu0
  %v618 = vadd.f32 %v521, %v617
  %v619 = vpop.f32.mrf.mxu0
  %v620 = vpop.f32.mrf.mxu0
  %v621 = vadd.f32 %v524, %v620
  %v622 = vpop.f32.mrf.mxu0
  %623 = vmatprep.mubr.bf16.mxu0 %v229
  %624 = vmatmul.mubr.bf16.gmra.mxu0 %v228
  %v625 = vpop.f32.mrf.mxu0
  %v626 = vadd.f32 %v529, %v625
  %v627 = vpop.f32.mrf.mxu0
  %v628 = vpop.f32.mrf.mxu0
  %v629 = vadd.f32 %v532, %v628
  %v630 = vpop.f32.mrf.mxu0
  %631 = vmatprep.mubr.bf16.mxu0 %v233
  %632 = vmatmul.mubr.bf16.gmra.mxu0 %v232
  %v633 = vpop.f32.mrf.mxu0
  %v634 = vadd.f32 %v537, %v633
  %v635 = vpop.f32.mrf.mxu0
  %v636 = vpop.f32.mrf.mxu0
  %v637 = vadd.f32 %v540, %v636
  %v638 = vpop.f32.mrf.mxu0
  %639 = vmatprep.mubr.bf16.mxu0 %v237
  %640 = vmatmul.mubr.bf16.gmra.mxu0 %v236
  %v641 = vpop.f32.mrf.mxu0
  %v642 = vadd.f32 %v545, %v641
  %v643 = vpop.f32.mrf.mxu0
  %v644 = vpop.f32.mrf.mxu0
  %v645 = vadd.f32 %v548, %v644
  %v646 = vpop.f32.mrf.mxu0
  %647 = vmatprep.mubr.bf16.mxu0 %v241
  %648 = vmatmul.mubr.bf16.gmra.mxu0 %v240
  %v649 = vpop.f32.mrf.mxu0
  %v650 = vadd.f32 %v553, %v649
  %v651 = vpop.f32.mrf.mxu0
  %v652 = vpop.f32.mrf.mxu0
  %v653 = vadd.f32 %v556, %v652
  %v654 = vpop.f32.mrf.mxu0
  %655 = vmatprep.mubr.bf16.mxu0 %v245
  %656 = vmatmul.mubr.bf16.gmra.mxu0 %v244
  %v657 = vpop.f32.mrf.mxu0
  %v658 = vadd.f32 %v561, %v657
  %v659 = vpop.f32.mrf.mxu0
  %v660 = vpop.f32.mrf.mxu0
  %v661 = vadd.f32 %v564, %v660
  %v662 = vpop.f32.mrf.mxu0
  %663 = vdwg.mxu0
  %v664 = vmax.f32 %v602, 0.0
  %v665 = vmax.f32 %v605, 0.0
  %v666 = vmax.f32 %v610, 0.0
  %v667 = vmax.f32 %v613, 0.0
  %v668 = vmax.f32 %v618, 0.0
  %v669 = vmax.f32 %v621, 0.0
  %v670 = vmax.f32 %v626, 0.0
  %v671 = vmax.f32 %v629, 0.0
  %v672 = vmax.f32 %v634, 0.0
  %v673 = vmax.f32 %v637, 0.0
  %v674 = vmax.f32 %v642, 0.0
  %v675 = vmax.f32 %v645, 0.0
  %v676 = vmax.f32 %v650, 0.0
  %v677 = vmax.f32 %v653, 0.0
  %v678 = vmax.f32 %v658, 0.0
  %v679 = vmax.f32 %v661, 0.0
  %v680 = vpack.c.bf16 %v665, %v664
  %v681 = vpack.c.bf16 %v667, %v666
  %v682 = vpack.c.bf16 %v669, %v668
  %v683 = vpack.c.bf16 %v671, %v670
  %v684 = vpack.c.bf16 %v673, %v672
  %v685 = vpack.c.bf16 %v675, %v674
  %v686 = vpack.c.bf16 %v677, %v676
  %v687 = vpack.c.bf16 %v679, %v678
  %v696 = vunpack.c.l.b16 %v680
  %v697 = vunpack.c.h.b16 %v680
  %v698 = vunpack.c.l.b16 %v681
  %v699 = vunpack.c.h.b16 %v681
  %v700 = vunpack.c.l.b16 %v682
  %v701 = vunpack.c.h.b16 %v682
  %v702 = vunpack.c.l.b16 %v683
  %v703 = vunpack.c.h.b16 %v683
  %v704 = vunpack.c.l.b16 %v684
  %v705 = vunpack.c.h.b16 %v684
  %v706 = vunpack.c.l.b16 %v685
  %v707 = vunpack.c.h.b16 %v685
  %v708 = vunpack.c.l.b16 %v686
  %v709 = vunpack.c.h.b16 %v686
  %v710 = vunpack.c.l.b16 %v687
  %v711 = vunpack.c.h.b16 %v687
  %v712 = vpack.c.b16 %v696, %v696
  %v713 = vpack.c.b16 %v697, %v697
  %v714 = vpack.c.b16 %v698, %v698
  %v715 = vpack.c.b16 %v699, %v699
  %v716 = vpack.c.b16 %v700, %v700
  %v717 = vpack.c.b16 %v701, %v701
  %v718 = vpack.c.b16 %v702, %v702
  %v719 = vpack.c.b16 %v703, %v703
  %v720 = vpack.c.b16 %v704, %v704
  %v721 = vpack.c.b16 %v705, %v705
  %v722 = vpack.c.b16 %v706, %v706
  %v723 = vpack.c.b16 %v707, %v707
  %v724 = vpack.c.b16 %v708, %v708
  %v725 = vpack.c.b16 %v709, %v709
  %v726 = vpack.c.b16 %v710, %v710
  %v727 = vpack.c.b16 %v711, %v711
  %744 = vst [vmem:[%s3] sm:$0xf] %v712
  %745 = vst [vmem:[%s3 + $0x4] sm:$0xf] %v713
  %746 = vst [vmem:[%s3 + $0x8] sm:$0xf] %v714
  %747 = vst [vmem:[%s3 + $0xc] sm:$0xf] %v715
  %748 = vst [vmem:[%s3 + $0x10] sm:$0xf] %v716
  %749 = vst [vmem:[%s3 + $0x14] sm:$0xf] %v717
  %750 = vst [vmem:[%s3 + $0x18] sm:$0xf] %v718
  %751 = vst [vmem:[%s3 + $0x1c] sm:$0xf] %v719
  %752 = vst [vmem:[%s3 + $0x20] sm:$0xf] %v720
  %753 = vst [vmem:[%s3 + $0x24] sm:$0xf] %v721
  %754 = vst [vmem:[%s3 + $0x28] sm:$0xf] %v722
  %755 = vst [vmem:[%s3 + $0x2c] sm:$0xf] %v723
  %756 = vst [vmem:[%s3 + $0x30] sm:$0xf] %v724
  %757 = vst [vmem:[%s3 + $0x34] sm:$0xf] %v725
  %758 = vst [vmem:[%s3 + $0x38] sm:$0xf] %v726
  %759 = vst [vmem:[%s3 + $0x3c] sm:$0xf] %v727
  // Predicated region
  $region14: #{mask_embed_forward.1} parent=0 // pred_check
    _
  $region15: #{mask_embed_forward.1} parent=0 // pred_check_branch
    %761 = sbr.rel (0) target = $region17
  $region16: #{mask_embed_forward.1} parent=0 // pred_region
    _
  $region17: #{mask_embed_forward.1} parent=0 // pred_fallthru
    _
  // Predicated region
  $region18: #{mask_embed_forward.1} parent=0 // pred_check
    _
  $region19: #{mask_embed_forward.1} parent=0 // pred_check_branch
    %763 = sbr.rel (0) target = $region21
  $region20: #{mask_embed_forward.1} parent=0 // pred_region
    _
  $region21: #{mask_embed_forward.1} parent=0 // pred_fallthru
    _

</llo_original>
